<compile_context>
chip_gen: v6e
topology: v6e:2x2x1
jax: 0.10.0
libtpu: 0.0.40
codegen_flags: <defaults>
</compile_context>

<pallas_src>
import functools

import jax
import jax.numpy as jnp
from jax.experimental import pallas as pl
from jax.experimental.pallas import tpu as pltpu


def _conv_bn_relu_kernel(w_ref, shift_ref, x_ref, o_ref, *, cin, cout):
    # w_ref:     SMEM (cout, cin)        BN-folded 1x1 conv weights (scalars)
    # shift_ref: SMEM (cout,)            BN-folded bias/shift       (scalars)
    # x_ref:     VMEM (cin, rows, 128)   dense pixel slab per input channel
    # o_ref:     VMEM (cout, rows, 128)  dense pixel slab per output channel
    x = x_ref[...].astype(jnp.float32)          # load once; f32 compute (v5e VPU)
    for co in range(cout):                      # fully unrolled VPU FMA chain
        acc = x[0] * w_ref[co, 0]
        for ci in range(1, cin):
            acc = acc + x[ci] * w_ref[co, ci]
        # Direct per-channel store: dense full-vreg vst, no concat/relayout.
        o_ref[co] = jnp.maximum(acc + shift_ref[co], 0.0).astype(o_ref.dtype)


def _pick_tile_rows(rows_total, max_rows=1024):
    # Largest divisor of rows_total that is <= max_rows (so tiles always cover
    # the array exactly -> no masked tails, no pad along the tile axis).
    best = 1
    for d in range(1, min(rows_total, max_rows) + 1):
        if rows_total % d == 0:
            best = d
    return best


@functools.partial(jax.jit, static_argnames=("eps",))
def node1_forward(x_nchw, w, b, gamma, beta, run_mean, run_var, *, eps=1e-5):
    B, Cin, H, W = x_nchw.shape
    Cout = w.shape[0]
    HW = H * W

    # Fold BN (inference semantics) + conv bias into weight scale & shift:
    #   scale = gamma / sqrt(var + eps)
    #   y = relu( (W * scale) @ x + (beta + (b - mean) * scale) )
    scale = gamma / jnp.sqrt(run_var + eps)                      # (Cout,)
    w_mat = (w.reshape(Cout, Cin) * scale[:, None]).astype(jnp.float32)
    shift = (beta + (b - run_mean) * scale).astype(jnp.float32)  # (Cout,)

    # Dense pixel slabs: (B, Cin, HW) -> (B, Cin, n_tiles, rows_tile, 128).
    x_flat = x_nchw.reshape(B, Cin, HW)
    hw_pad = ((HW + 127) // 128) * 128
    if hw_pad != HW:
        # TODO(synk): ragged lane tail (HW % 128 != 0) falls back to pad+slice,
        # which costs one extra HBM round trip; aligned HW pays nothing.
        x_flat = jnp.pad(x_flat, ((0, 0), (0, 0), (0, hw_pad - HW)))
    rows_total = hw_pad // 128
    rows_tile = _pick_tile_rows(rows_total)       # divides rows_total
    n_tiles = rows_total // rows_tile
    x5 = x_flat.reshape(B, Cin, n_tiles, rows_tile, 128)

    kernel = functools.partial(_conv_bn_relu_kernel, cin=Cin, cout=Cout)

    out5 = pl.pallas_call(
        kernel,
        out_shape=jax.ShapeDtypeStruct((B, Cout, n_tiles, rows_tile, 128),
                                       x_nchw.dtype),
        grid_spec=pltpu.PrefetchScalarGridSpec(
            num_scalar_prefetch=0,
            grid=(B, n_tiles),
            in_specs=[
                pl.BlockSpec(memory_space=pltpu.MemorySpace.SMEM),   # folded weights
                pl.BlockSpec(memory_space=pltpu.MemorySpace.SMEM),   # folded shift
                pl.BlockSpec((None, Cin, None, rows_tile, 128),
                             lambda bi, j: (bi, 0, j, 0, 0)),
            ],
            out_specs=pl.BlockSpec((None, Cout, None, rows_tile, 128),
                                   lambda bi, j: (bi, 0, j, 0, 0)),
        ),
        compiler_params=pltpu.CompilerParams(
            # both axes independent -> shards across v7x's 2 TensorCores
            dimension_semantics=("parallel", "parallel")),
        cost_estimate=pl.CostEstimate(
            flops=2 * B * Cout * Cin * HW,
            transcendentals=0,
            bytes_accessed=B * (Cin + Cout) * HW * 4),
    )(w_mat, shift, x5)

    out_flat = out5.reshape(B, Cout, hw_pad)
    if hw_pad != HW:
        out_flat = out_flat[:, :, :HW]
    return out_flat.reshape(B, Cout, H, W)


def _reference(x_nchw, w, b, gamma, beta, run_mean, run_var, eps=1e-5):
    B, Cin, H, W = x_nchw.shape
    Cout = w.shape[0]
    xf = jnp.transpose(x_nchw, (0, 2, 3, 1)).reshape(-1, Cin)
    y = xf @ jnp.transpose(w.reshape(Cout, Cin)) + b
    y = (y - run_mean) / jnp.sqrt(run_var + eps) * gamma + beta
    y = jnp.maximum(y, 0.0)
    return jnp.transpose(y.reshape(B, H, W, Cout), (0, 3, 1, 2))


if __name__ == "__main__":
    cin, cout = 3, 3
    B, H, W = 2, 16, 16

    key = jax.random.PRNGKey(0)
    kx, kw, kb, kg, kbeta, km, kv = jax.random.split(key, 7)

    x = jax.random.normal(kx, (B, cin, H, W), dtype=jnp.float32)

    # Deterministic parameter init (synthetic, not a checkpoint load)
    conv_w = jax.random.normal(kw, (cout, cin, 1, 1), dtype=jnp.float32) * 0.5
    conv_b = jax.random.normal(kb, (cout,), dtype=jnp.float32) * 0.1
    bn_gamma = 1.0 + 0.1 * jax.random.normal(kg, (cout,), dtype=jnp.float32)
    bn_beta = 0.1 * jax.random.normal(kbeta, (cout,), dtype=jnp.float32)
    bn_mean = 0.1 * jax.random.normal(km, (cout,), dtype=jnp.float32)
    bn_var = jnp.abs(1.0 + 0.1 * jax.random.normal(kv, (cout,), dtype=jnp.float32))
    # TODO(synk): BatchNorm is implemented with inference (running-stat) semantics;
    # PyTorch training-mode batch statistics are not reproduced here.

    out = node1_forward(x, conv_w, conv_b, bn_gamma, bn_beta, bn_mean, bn_var)
    out = jax.block_until_ready(out)

    ref = _reference(x, conv_w, conv_b, bn_gamma, bn_beta, bn_mean, bn_var)
    assert out.shape == (B, cout, H, W)
    assert jnp.allclose(out, ref, atol=1e-5, rtol=1e-5)

    print("KERNEL_OK")
</pallas_src>

<mosaic_0001>
module attributes {stable_mosaic.version = 11 : i64} {
  func.func @_conv_bn_relu_kernel(%arg0: i32, %arg1: i32, %arg2: memref<3x3xf32, #tpu.memory_space<smem>>, %arg3: memref<3xf32, #tpu.memory_space<smem>>, %arg4: memref<1x3x1x2x128xf32, #tpu.memory_space<vmem>>, %arg5: memref<1x3x1x2x128xf32, #tpu.memory_space<vmem>>) attributes {dimension_semantics = [#tpu.dimension_semantics<parallel>, #tpu.dimension_semantics<parallel>], iteration_bounds = array<i64: 2, 1>, scalar_prefetch = 0 : i64, scratch_operands = 0 : i64, tpu.core_type = #tpu.core_type<tc>, window_params = [{transform_indices = @transform_0, window_bounds = array<i64: 3, 3>}, {transform_indices = @transform_1, window_bounds = array<i64: 3>}, {transform_indices = @transform_2, window_bounds = array<i64: 1, 3, 1, 2, 128>}, {transform_indices = @transform_3, window_bounds = array<i64: 1, 3, 1, 2, 128>}]} {
    %c0 = arith.constant 0 : index
    %c0_0 = arith.constant 0 : index
    %c0_1 = arith.constant 0 : index
    %c0_2 = arith.constant 0 : index
    %c0_3 = arith.constant 0 : index
    %0 = vector.load %arg4[%c0, %c0_0, %c0_1, %c0_2, %c0_3] : memref<1x3x1x2x128xf32, #tpu.memory_space<vmem>>, vector<1x3x1x2x128xf32>
    %1 = vector.shape_cast %0 : vector<1x3x1x2x128xf32> to vector<3x2x128xf32>
    %2 = vector.extract_strided_slice %1 {offsets = [0, 0, 0], sizes = [1, 2, 128], strides = [1, 1, 1]} : vector<3x2x128xf32> to vector<1x2x128xf32>
    %3 = vector.shape_cast %2 : vector<1x2x128xf32> to vector<2x128xf32>
    %c0_4 = arith.constant 0 : index
    %c0_5 = arith.constant 0 : index
    %4 = memref.load %arg2[%c0_4, %c0_5] : memref<3x3xf32, #tpu.memory_space<smem>>
    %5 = vector.broadcast %4 : f32 to vector<2x128xf32>
    %6 = arith.mulf %3, %5 : vector<2x128xf32>
    %7 = vector.extract_strided_slice %1 {offsets = [1, 0, 0], sizes = [1, 2, 128], strides = [1, 1, 1]} : vector<3x2x128xf32> to vector<1x2x128xf32>
    %8 = vector.shape_cast %7 : vector<1x2x128xf32> to vector<2x128xf32>
    %c0_6 = arith.constant 0 : index
    %c1 = arith.constant 1 : index
    %9 = memref.load %arg2[%c0_6, %c1] : memref<3x3xf32, #tpu.memory_space<smem>>
    %10 = vector.broadcast %9 : f32 to vector<2x128xf32>
    %11 = arith.mulf %8, %10 : vector<2x128xf32>
    %12 = arith.addf %6, %11 : vector<2x128xf32>
    %13 = vector.extract_strided_slice %1 {offsets = [2, 0, 0], sizes = [1, 2, 128], strides = [1, 1, 1]} : vector<3x2x128xf32> to vector<1x2x128xf32>
    %14 = vector.shape_cast %13 : vector<1x2x128xf32> to vector<2x128xf32>
    %c0_7 = arith.constant 0 : index
    %c2 = arith.constant 2 : index
    %15 = memref.load %arg2[%c0_7, %c2] : memref<3x3xf32, #tpu.memory_space<smem>>
    %16 = vector.broadcast %15 : f32 to vector<2x128xf32>
    %17 = arith.mulf %14, %16 : vector<2x128xf32>
    %18 = arith.addf %12, %17 : vector<2x128xf32>
    %c0_8 = arith.constant 0 : index
    %19 = memref.load %arg3[%c0_8] : memref<3xf32, #tpu.memory_space<smem>>
    %20 = vector.broadcast %19 : f32 to vector<2x128xf32>
    %21 = arith.addf %18, %20 : vector<2x128xf32>
    %cst = arith.constant 0.000000e+00 : f32
    %22 = vector.broadcast %cst : f32 to vector<2x128xf32>
    %23 = arith.maximumf %21, %22 : vector<2x128xf32>
    %c0_9 = arith.constant 0 : index
    %c0_10 = arith.constant 0 : index
    %c0_11 = arith.constant 0 : index
    %c0_12 = arith.constant 0 : index
    %c0_13 = arith.constant 0 : index
    %24 = vector.load %arg5[%c0_9, %c0_10, %c0_11, %c0_12, %c0_13] : memref<1x3x1x2x128xf32, #tpu.memory_space<vmem>>, vector<1x1x1x2x128xf32>
    %25 = vector.shape_cast %24 : vector<1x1x1x2x128xf32> to vector<2x128xf32>
    %26 = vector.shape_cast %23 : vector<2x128xf32> to vector<1x1x1x2x128xf32>
    tpu.vector_store %arg5[%c0_9, %c0_10, %c0_11, %c0_12, %c0_13], %26 {strides = array<i32>} : memref<1x3x1x2x128xf32, #tpu.memory_space<vmem>>, vector<1x1x1x2x128xf32>,
    %27 = vector.extract_strided_slice %1 {offsets = [0, 0, 0], sizes = [1, 2, 128], strides = [1, 1, 1]} : vector<3x2x128xf32> to vector<1x2x128xf32>
    %28 = vector.shape_cast %27 : vector<1x2x128xf32> to vector<2x128xf32>
    %c1_14 = arith.constant 1 : index
    %c0_15 = arith.constant 0 : index
    %29 = memref.load %arg2[%c1_14, %c0_15] : memref<3x3xf32, #tpu.memory_space<smem>>
    %30 = vector.broadcast %29 : f32 to vector<2x128xf32>
    %31 = arith.mulf %28, %30 : vector<2x128xf32>
    %32 = vector.extract_strided_slice %1 {offsets = [1, 0, 0], sizes = [1, 2, 128], strides = [1, 1, 1]} : vector<3x2x128xf32> to vector<1x2x128xf32>
    %33 = vector.shape_cast %32 : vector<1x2x128xf32> to vector<2x128xf32>
    %c1_16 = arith.constant 1 : index
    %c1_17 = arith.constant 1 : index
    %34 = memref.load %arg2[%c1_16, %c1_17] : memref<3x3xf32, #tpu.memory_space<smem>>
    %35 = vector.broadcast %34 : f32 to vector<2x128xf32>
    %36 = arith.mulf %33, %35 : vector<2x128xf32>
    %37 = arith.addf %31, %36 : vector<2x128xf32>
    %38 = vector.extract_strided_slice %1 {offsets = [2, 0, 0], sizes = [1, 2, 128], strides = [1, 1, 1]} : vector<3x2x128xf32> to vector<1x2x128xf32>
    %39 = vector.shape_cast %38 : vector<1x2x128xf32> to vector<2x128xf32>
    %c1_18 = arith.constant 1 : index
    %c2_19 = arith.constant 2 : index
    %40 = memref.load %arg2[%c1_18, %c2_19] : memref<3x3xf32, #tpu.memory_space<smem>>
    %41 = vector.broadcast %40 : f32 to vector<2x128xf32>
    %42 = arith.mulf %39, %41 : vector<2x128xf32>
    %43 = arith.addf %37, %42 : vector<2x128xf32>
    %c1_20 = arith.constant 1 : index
    %44 = memref.load %arg3[%c1_20] : memref<3xf32, #tpu.memory_space<smem>>
    %45 = vector.broadcast %44 : f32 to vector<2x128xf32>
    %46 = arith.addf %43, %45 : vector<2x128xf32>
    %cst_21 = arith.constant 0.000000e+00 : f32
    %47 = vector.broadcast %cst_21 : f32 to vector<2x128xf32>
    %48 = arith.maximumf %46, %47 : vector<2x128xf32>
    %c0_22 = arith.constant 0 : index
    %c1_23 = arith.constant 1 : index
    %c0_24 = arith.constant 0 : index
    %c0_25 = arith.constant 0 : index
    %c0_26 = arith.constant 0 : index
    %49 = vector.load %arg5[%c0_22, %c1_23, %c0_24, %c0_25, %c0_26] : memref<1x3x1x2x128xf32, #tpu.memory_space<vmem>>, vector<1x1x1x2x128xf32>
    %50 = vector.shape_cast %49 : vector<1x1x1x2x128xf32> to vector<2x128xf32>
    %51 = vector.shape_cast %48 : vector<2x128xf32> to vector<1x1x1x2x128xf32>
    tpu.vector_store %arg5[%c0_22, %c1_23, %c0_24, %c0_25, %c0_26], %51 {strides = array<i32>} : memref<1x3x1x2x128xf32, #tpu.memory_space<vmem>>, vector<1x1x1x2x128xf32>,
    %52 = vector.extract_strided_slice %1 {offsets = [0, 0, 0], sizes = [1, 2, 128], strides = [1, 1, 1]} : vector<3x2x128xf32> to vector<1x2x128xf32>
    %53 = vector.shape_cast %52 : vector<1x2x128xf32> to vector<2x128xf32>
    %c2_27 = arith.constant 2 : index
    %c0_28 = arith.constant 0 : index
    %54 = memref.load %arg2[%c2_27, %c0_28] : memref<3x3xf32, #tpu.memory_space<smem>>
    %55 = vector.broadcast %54 : f32 to vector<2x128xf32>
    %56 = arith.mulf %53, %55 : vector<2x128xf32>
    %57 = vector.extract_strided_slice %1 {offsets = [1, 0, 0], sizes = [1, 2, 128], strides = [1, 1, 1]} : vector<3x2x128xf32> to vector<1x2x128xf32>
    %58 = vector.shape_cast %57 : vector<1x2x128xf32> to vector<2x128xf32>
    %c2_29 = arith.constant 2 : index
    %c1_30 = arith.constant 1 : index
    %59 = memref.load %arg2[%c2_29, %c1_30] : memref<3x3xf32, #tpu.memory_space<smem>>
    %60 = vector.broadcast %59 : f32 to vector<2x128xf32>
    %61 = arith.mulf %58, %60 : vector<2x128xf32>
    %62 = arith.addf %56, %61 : vector<2x128xf32>
    %63 = vector.extract_strided_slice %1 {offsets = [2, 0, 0], sizes = [1, 2, 128], strides = [1, 1, 1]} : vector<3x2x128xf32> to vector<1x2x128xf32>
    %64 = vector.shape_cast %63 : vector<1x2x128xf32> to vector<2x128xf32>
    %c2_31 = arith.constant 2 : index
    %c2_32 = arith.constant 2 : index
    %65 = memref.load %arg2[%c2_31, %c2_32] : memref<3x3xf32, #tpu.memory_space<smem>>
    %66 = vector.broadcast %65 : f32 to vector<2x128xf32>
    %67 = arith.mulf %64, %66 : vector<2x128xf32>
    %68 = arith.addf %62, %67 : vector<2x128xf32>
    %c2_33 = arith.constant 2 : index
    %69 = memref.load %arg3[%c2_33] : memref<3xf32, #tpu.memory_space<smem>>
    %70 = vector.broadcast %69 : f32 to vector<2x128xf32>
    %71 = arith.addf %68, %70 : vector<2x128xf32>
    %cst_34 = arith.constant 0.000000e+00 : f32
    %72 = vector.broadcast %cst_34 : f32 to vector<2x128xf32>
    %73 = arith.maximumf %71, %72 : vector<2x128xf32>
    %c0_35 = arith.constant 0 : index
    %c2_36 = arith.constant 2 : index
    %c0_37 = arith.constant 0 : index
    %c0_38 = arith.constant 0 : index
    %c0_39 = arith.constant 0 : index
    %74 = vector.load %arg5[%c0_35, %c2_36, %c0_37, %c0_38, %c0_39] : memref<1x3x1x2x128xf32, #tpu.memory_space<vmem>>, vector<1x1x1x2x128xf32>
    %75 = vector.shape_cast %74 : vector<1x1x1x2x128xf32> to vector<2x128xf32>
    %76 = vector.shape_cast %73 : vector<2x128xf32> to vector<1x1x1x2x128xf32>
    tpu.vector_store %arg5[%c0_35, %c2_36, %c0_37, %c0_38, %c0_39], %76 {strides = array<i32>} : memref<1x3x1x2x128xf32, #tpu.memory_space<vmem>>, vector<1x1x1x2x128xf32>,
    return
  }
  func.func @transform_0(%arg0: i32, %arg1: i32) -> (i32, i32) {
    %c0_i32 = arith.constant 0 : i32
    %c0_i32_0 = arith.constant 0 : i32
    %c0_i32_1 = arith.constant 0 : i32
    return %c0_i32, %c0_i32_0 : i32, i32
  }
  func.func @transform_1(%arg0: i32, %arg1: i32) -> i32 {
    %c0_i32 = arith.constant 0 : i32
    %c0_i32_0 = arith.constant 0 : i32
    return %c0_i32 : i32
  }
  func.func @transform_2(%arg0: i32, %arg1: i32) -> (i32, i32, i32, i32, i32) {
    %c0_i32 = arith.constant 0 : i32
    %c0_i32_0 = arith.constant 0 : i32
    %c0_i32_1 = arith.constant 0 : i32
    %c0_i32_2 = arith.constant 0 : i32
    return %arg0, %c0_i32, %arg1, %c0_i32_0, %c0_i32_1 : i32, i32, i32, i32, i32
  }
  func.func @transform_3(%arg0: i32, %arg1: i32) -> (i32, i32, i32, i32, i32) {
    %c0_i32 = arith.constant 0 : i32
    %c0_i32_0 = arith.constant 0 : i32
    %c0_i32_1 = arith.constant 0 : i32
    %c0_i32_2 = arith.constant 0 : i32
    return %arg0, %c0_i32, %arg1, %c0_i32_0, %c0_i32_1 : i32, i32, i32, i32, i32
  }
}

</mosaic_0001>

<llo_original>
// kernel: node1_forward.1
$region0: #{node1_forward.1}
  #allocation0 [shape = 'u32[]', space=smem, size = 0x4, offset = 0x4, fixed_abs, tag = 'smem constant byte address 0x4 - core index']
  #allocation1 [shape = 'u32[144,128]{1,0:T(1,128)}', space=vmem, size = 0x12000, scoped, tag = 'internal scratch']
  %s0 = inlined_call_operand.vmem [shape: f32[3,3], index: 0, kind: input, shape index: {}]
  %s1 = inlined_call_operand.vmem [shape: f32[3], index: 1, kind: input, shape index: {}]
  %s2 = inlined_call_operand.vmem [shape: f32[2,3,1,2,128], index: 2, kind: input, shape index: {}]
  %s3 = inlined_call_operand.vmem [shape: f32[2,3,1,2,128], index: 3, kind: output, shape index: {}]
  %s4 = sld [smem:[#allocation0]]
  $region53: #{node1_forward.1} parent=0
    _
  %s6 = ssub.s32 1, %s4
  %s7 = scalar_select 0, %s6, %s4
  $region1: #{node1_forward.1} parent=0
    #allocation2 [shape = 'u8[2048]{0}', space=smem, size = 0x800, scoped, tag = 'input window, operand 0, single buffered']
    #allocation3 [shape = 's32[2]{0}', space=sflag, size = 0x8, scoped, tag = 'scoped memory for node1_forward.1']
    #allocation4 [shape = 'u8[512]{0}', space=smem, size = 0x200, scoped, tag = 'input window, operand 1, single buffered']
    #allocation5 [shape = 's32[1]{0}', space=sflag, size = 0x4, scoped, tag = 'scoped memory for node1_forward.1']
    %8 = vsyncpa [#allocation3], 0
    %9 = vsyncpa [#allocation5], 0
    loop: start=0, step=1, limit=4
    $region2: #{node1_forward.1} parent=1 // loop_pre_header
      _
    $region3: #{node1_forward.1} parent=1 // loop_header
      %s11 = sphi 0, %s15
      %p12 = scmp.ge.s32.totalorder %s11, 4
      %s18 = sphi 0, %s30
      %s19 = sphi 0, %s26
      %s20 = sphi 0, %s18
      %s21 = sphi 0, %s19
      %s22 = sphi 0, %s20
      %s23 = sphi 0, %s21
      %s31 = sphi 0, %s31
      %s33 = sphi 0, %s31
      %s34 = sphi 0, %s33
      %s48 = sphi 0, %s34
      %s52 = sphi 0, %s52
      %s54 = sphi 0, %s52
      %s55 = sphi 0, %s54
      %s69 = sphi 0, %s55
      %s77 = sphi 0, %s79
      %s80 = sphi 0, %s77
      %s81 = sphi 0, %s80
      %s97 = sphi 0, %s81
      %s105 = sphi 0, %s107
      %s108 = sphi 0, %s105
      %s109 = sphi 0, %s108
      %s125 = sphi 0, %s109
    $region4: #{node1_forward.1} parent=1 // loop_header_branch
      %14 = sbr.rel (%p12) target = $region8
    $region5: #{node1_forward.1} parent=1 // loop_body
      %s16 = ssub.s32 %s11, 1
      %s17 = ssub.s32 %s11, 2
      %s24 = sadd.s32 1, %s19
      %p25 = scmp.ge.s32.totalorder %s24, 1
      %s26 = scalar_select %p25, 0, %s24
      %s27 = sadd.s32 1, %s18
      %s28 = scalar_select %p25, %s27, %s18
      %p29 = scmp.ge.s32.totalorder %s28, 2
      %s30 = scalar_select %p29, 0, %s28
      %s32 = sadd.s32 %s31, 1
      %p35 = scmp.eq.s32.totalorder %s11, 1
      %p36 = scmp.ne.s32.totalorder %s31, %s33
      %p37 = scmp.eq.s32.totalorder %s11, 0
      %p38 = por %p36, %p37
      %p39 = scmp.ne.s32.totalorder %s31, %s33
      %p40 = scmp.eq.s32.totalorder %s16, 1
      %p41 = por %p39, %p40
      %p42 = scmp.ne.s32.totalorder %s33, %s34
      %p43 = scmp.eq.s32.totalorder %s16, 0
      %p44 = por %p42, %p43
      %p45 = scmp.ne.s32.totalorder %s33, %s34
      %p46 = scmp.eq.s32.totalorder %s17, 1
      %p47 = por %p45, %p46
      %p49 = scmp.ne.s32.totalorder %s34, %s48
      %p50 = scmp.eq.s32.totalorder %s17, 0
      %p51 = por %p49, %p50
      %s53 = sadd.s32 %s52, 1
      %p56 = scmp.eq.s32.totalorder %s11, 1
      %p57 = scmp.ne.s32.totalorder %s52, %s54
      %p58 = scmp.eq.s32.totalorder %s11, 0
      %p59 = por %p57, %p58
      %p60 = scmp.ne.s32.totalorder %s52, %s54
      %p61 = scmp.eq.s32.totalorder %s16, 1
      %p62 = por %p60, %p61
      %p63 = scmp.ne.s32.totalorder %s54, %s55
      %p64 = scmp.eq.s32.totalorder %s16, 0
      %p65 = por %p63, %p64
      %p66 = scmp.ne.s32.totalorder %s54, %s55
      %p67 = scmp.eq.s32.totalorder %s17, 1
      %p68 = por %p66, %p67
      %p70 = scmp.ne.s32.totalorder %s55, %s69
      %p71 = scmp.eq.s32.totalorder %s17, 0
      %p72 = por %p70, %p71
      %s73 = ssub.s32 %s18, %s30
      %s74 = ssub.s32 %s19, %s26
      %s75 = sor.u32 %s73, %s74
      %p76 = scmp.eq.s32.totalorder %s75, 0
      %s78 = sadd.s32 %s77, 1
      %s79 = scalar_select %p76, %s77, %s78
      %p82 = pneg %p76
      %p83 = scmp.eq.s32.totalorder %s11, 1
      %p84 = por %p82, %p83
      %p85 = scmp.ne.s32.totalorder %s77, %s80
      %p86 = scmp.eq.s32.totalorder %s11, 0
      %p87 = por %p85, %p86
      %p88 = scmp.ne.s32.totalorder %s77, %s80
      %p89 = scmp.eq.s32.totalorder %s16, 1
      %p90 = por %p88, %p89
      %p91 = scmp.ne.s32.totalorder %s80, %s81
      %p92 = scmp.eq.s32.totalorder %s16, 0
      %p93 = por %p91, %p92
      %p94 = scmp.ne.s32.totalorder %s80, %s81
      %p95 = scmp.eq.s32.totalorder %s17, 1
      %p96 = por %p94, %p95
      %p98 = scmp.ne.s32.totalorder %s81, %s97
      %p99 = scmp.eq.s32.totalorder %s17, 0
      %p100 = por %p98, %p99
      %s101 = ssub.s32 %s18, %s30
      %s102 = ssub.s32 %s19, %s26
      %s103 = sor.u32 %s101, %s102
      %p104 = scmp.eq.s32.totalorder %s103, 0
      %s106 = sadd.s32 %s105, 1
      %s107 = scalar_select %p104, %s105, %s106
      %p110 = pneg %p104
      %p111 = scmp.eq.s32.totalorder %s11, 1
      %p112 = por %p110, %p111
      %p113 = scmp.ne.s32.totalorder %s105, %s108
      %p114 = scmp.eq.s32.totalorder %s11, 0
      %p115 = por %p113, %p114
      %p116 = scmp.ne.s32.totalorder %s105, %s108
      %p117 = scmp.eq.s32.totalorder %s16, 1
      %p118 = por %p116, %p117
      %p119 = scmp.ne.s32.totalorder %s108, %s109
      %p120 = scmp.eq.s32.totalorder %s16, 0
      %p121 = por %p119, %p120
      %p122 = scmp.ne.s32.totalorder %s108, %s109
      %p123 = scmp.eq.s32.totalorder %s17, 1
      %p124 = por %p122, %p123
      %p126 = scmp.ne.s32.totalorder %s109, %s125
      %p127 = scmp.eq.s32.totalorder %s17, 0
      %p128 = por %p126, %p127
      %p129 = scmp.le.s32.totalorder 1, %s11
      %p130 = scmp.lt.s32.totalorder %s11, 3
      %p131 = pnand %p129, %p130
      %p132 = pneg %p131
      // Predicated region
      $region9: #{node1_forward.1} parent=5 // pred_check
        _
      $region10: #{node1_forward.1} parent=5 // pred_check_branch
        %134 = sbr.rel (%p131) target = $region12
      $region11: #{node1_forward.1} parent=5 // pred_region
        %s135 = ssub.s32 %s11, 1
        // Predicated region
        $region13: #{node1_forward.1} parent=11 // pred_check
          %p136 = pneg %p44
        $region14: #{node1_forward.1} parent=11 // pred_check_branch
          %138 = sbr.rel (%p136) target = $region16
        $region15: #{node1_forward.1} parent=11 // pred_region
          %s140 = ssub.s32 64, 64
          %141 = vsyncadd [#allocation3], %s140
          %s143 = sshll.u32 %s0, 4
          %s144 = int_to_ptr.vmem [resolvable:$true] %s143
          %146 = dma.vmem_to_smem %s144, 64, [#allocation2], [#allocation3]
        $region16: #{node1_forward.1} parent=11 // pred_fallthru
          _
        // Predicated region
        $region17: #{node1_forward.1} parent=11 // pred_check
          %p147 = pneg %p65
        $region18: #{node1_forward.1} parent=11 // pred_check_branch
          %149 = sbr.rel (%p147) target = $region20
        $region19: #{node1_forward.1} parent=11 // pred_region
          %s151 = ssub.s32 16, 16
          %152 = vsyncadd [#allocation5], %s151
          %s154 = sshll.u32 %s1, 4
          %s155 = int_to_ptr.vmem [resolvable:$true] %s154
          %157 = dma.vmem_to_smem %s155, 16, [#allocation4], [#allocation5]
        $region20: #{node1_forward.1} parent=11 // pred_fallthru
          _
      $region12: #{node1_forward.1} parent=5 // pred_fallthru
        _
      %p158 = scmp.lt.s32.totalorder %s11, 2
      // Predicated region
      $region21: #{node1_forward.1} parent=5 // pred_check
        %p159 = pneg %p158
      $region22: #{node1_forward.1} parent=5 // pred_check_branch
        %161 = sbr.rel (%p159) target = $region24
      $region23: #{node1_forward.1} parent=5 // pred_region
        // Predicated region
        $region25: #{node1_forward.1} parent=23 // pred_check
          %p162 = pneg %p87
        $region26: #{node1_forward.1} parent=23 // pred_check_branch
          %164 = sbr.rel (%p162) target = $region28
        $region27: #{node1_forward.1} parent=23 // pred_region
          %p165 = scmp.lt.s32.totalorder %s18, 1
          %s166 = scalar_select %p165, %s18, 1
          %p167 = scmp.lt.s32.totalorder %s19, 0
          %s168 = scalar_select %p167, %s19, 0
          %s169 = smul.addr %s166, 3
          %s170 = sadd.s32 %s168, %s169
          %s171 = smul.addr %s170, 2
          %s172 = scalar_lea.vmem %s2, %s171
        $region28: #{node1_forward.1} parent=23 // pred_fallthru
          _
      $region24: #{node1_forward.1} parent=5 // pred_fallthru
        _
      %p173 = scmp.le.s32.totalorder 1, %s11
      %p174 = scmp.lt.s32.totalorder %s11, 3
      %p175 = pnand %p173, %p174
      %p176 = pneg %p175
      // Predicated region
      $region29: #{node1_forward.1} parent=5 // pred_check
        _
      $region30: #{node1_forward.1} parent=5 // pred_check_branch
        %178 = sbr.rel (%p175) target = $region32
      $region31: #{node1_forward.1} parent=5 // pred_region
        %s179 = ssub.s32 %s11, 1
        // Predicated region
        $region33: #{node1_forward.1} parent=31 // pred_check
          %p180 = pneg %p44
        $region34: #{node1_forward.1} parent=31 // pred_check_branch
          %182 = sbr.rel (%p180) target = $region36
        $region35: #{node1_forward.1} parent=31 // pred_region
          %183 = dma.done [#allocation3], 64
        $region36: #{node1_forward.1} parent=31 // pred_fallthru
          _
        // Predicated region
        $region37: #{node1_forward.1} parent=31 // pred_check
          %p184 = pneg %p65
        $region38: #{node1_forward.1} parent=31 // pred_check_branch
          %186 = sbr.rel (%p184) target = $region40
        $region39: #{node1_forward.1} parent=31 // pred_region
          %187 = dma.done [#allocation5], 16
        $region40: #{node1_forward.1} parent=31 // pred_fallthru
          _
        %188 = sfence
        %p189 = pneg %p44
        %p190 = pneg %p41
        %p191 = pneg %p65
        %p192 = pneg %p62
        %p193 = scmp.lt.s32.totalorder %s20, 1
        %s194 = scalar_select %p193, %s20, 1
        %p195 = scmp.lt.s32.totalorder %s21, 0
        %s196 = scalar_select %p195, %s21, 0
        %s197 = smul.addr %s194, 3
        %s198 = sadd.s32 %s196, %s197
        %s199 = smul.addr %s198, 2
        %s200 = scalar_lea.vmem %s2, %s199
        %p201 = pneg %p93
        %p202 = pneg %p90
        %p203 = pneg %p121
        %p204 = pneg %p118
        %p205 = scmp.lt.s32.totalorder %s20, 1
        %s206 = scalar_select %p205, %s20, 1
        %p207 = scmp.lt.s32.totalorder %s21, 0
        %s208 = scalar_select %p207, %s21, 0
        %s209 = smul.addr %s206, 3
        %s210 = sadd.s32 %s208, %s209
        %s211 = smul.addr %s210, 2
        %s212 = scalar_lea.vmem %s3, %s211
        %p213 = scmp.lt.s32.totalorder %s20, 1
        %s214 = scalar_select %p213, %s20, 1
        %p215 = scmp.lt.s32.totalorder %s21, 0
        %s216 = scalar_select %p215, %s21, 0
        %s217 = smul.addr %s214, 3
        %s218 = sadd.s32 %s216, %s217
        %s219 = smul.addr %s218, 2
        %s220 = scalar_lea.vmem %s2, %s219
        %p221 = scmp.lt.s32.totalorder %s20, 1
        %s222 = scalar_select %p221, %s20, 1
        %p223 = scmp.lt.s32.totalorder %s21, 0
        %s224 = scalar_select %p223, %s21, 0
        %s225 = smul.addr %s222, 3
        %s226 = sadd.s32 %s224, %s225
        %s227 = smul.addr %s226, 2
        %s228 = scalar_lea.vmem %s3, %s227
        %v229 = vld [vmem:[%s220] sm:$0x3]
        %v230 = vld [vmem:[%s220 + $0x2] sm:$0x3]
        %v231 = vld [vmem:[%s220 + $0x4] sm:$0x3]
        %s232 = sld [smem:[#allocation2]]
        %v233 = vstv %s232
        %v234 = vmul.f32 %v229, %v233
        %s235 = sld [smem:[#allocation2 + $0x1]]
        %v236 = vstv %s235
        %v237 = vmul.f32 %v230, %v236
        %v238 = vadd.f32 %v234, %v237
        %s239 = sld [smem:[#allocation2 + $0x2]]
        %v240 = vstv %s239
        %v241 = vmul.f32 %v231, %v240
        %v242 = vadd.f32 %v238, %v241
        %s243 = sld [smem:[#allocation4]]
        %v244 = vstv %s243
        %v245 = vadd.f32 %v242, %v244
        %v246 = vmax.f32 %v245, 0.0
        %247 = vst [vmem:[%s228] sm:$0x3] %v246
        %s248 = sld [smem:[#allocation2 + $0x80]]
        %v249 = vstv %s248
        %v250 = vmul.f32 %v229, %v249
        %s251 = sld [smem:[#allocation2 + $0x81]]
        %v252 = vstv %s251
        %v253 = vmul.f32 %v230, %v252
        %v254 = vadd.f32 %v250, %v253
        %s255 = sld [smem:[#allocation2 + $0x82]]
        %v256 = vstv %s255
        %v257 = vmul.f32 %v231, %v256
        %v258 = vadd.f32 %v254, %v257
        %s259 = sld [smem:[#allocation4 + $0x1]]
        %v260 = vstv %s259
        %v261 = vadd.f32 %v258, %v260
        %v262 = vmax.f32 %v261, 0.0
        %s263 = scalar_lea.vmem %s228, 2
        %264 = vst [vmem:[%s263] sm:$0x3] %v262
        %s265 = sld [smem:[#allocation2 + $0x100]]
        %v266 = vstv %s265
        %v267 = vmul.f32 %v229, %v266
        %s268 = sld [smem:[#allocation2 + $0x101]]
        %v269 = vstv %s268
        %v270 = vmul.f32 %v230, %v269
        %v271 = vadd.f32 %v267, %v270
        %s272 = sld [smem:[#allocation2 + $0x102]]
        %v273 = vstv %s272
        %v274 = vmul.f32 %v231, %v273
        %v275 = vadd.f32 %v271, %v274
        %s276 = sld [smem:[#allocation4 + $0x2]]
        %v277 = vstv %s276
        %v278 = vadd.f32 %v275, %v277
        %v279 = vmax.f32 %v278, 0.0
        %s280 = scalar_lea.vmem %s228, 4
        %281 = vst [vmem:[%s280] sm:$0x3] %v279
        %p282 = scmp.lt.s32.totalorder %s20, 1
        %s283 = scalar_select %p282, %s20, 1
        %p284 = scmp.lt.s32.totalorder %s21, 0
        %s285 = scalar_select %p284, %s21, 0
        %s286 = smul.addr %s283, 3
        %s287 = sadd.s32 %s285, %s286
        %s288 = smul.addr %s287, 2
        %s289 = scalar_lea.vmem %s3, %s288
        // Predicated region
        $region41: #{node1_forward.1} parent=31 // pred_check
          %p290 = pneg %p118
        $region42: #{node1_forward.1} parent=31 // pred_check_branch
          %292 = sbr.rel (%p290) target = $region44
        $region43: #{node1_forward.1} parent=31 // pred_region
          _
        $region44: #{node1_forward.1} parent=31 // pred_fallthru
          _
      $region32: #{node1_forward.1} parent=5 // pred_fallthru
        _
      %p293 = scmp.le.s32.totalorder 2, %s11
      // Predicated region
      $region45: #{node1_forward.1} parent=5 // pred_check
        %p294 = pneg %p293
      $region46: #{node1_forward.1} parent=5 // pred_check_branch
        %296 = sbr.rel (%p294) target = $region48
      $region47: #{node1_forward.1} parent=5 // pred_region
        %s297 = ssub.s32 %s11, 2
        // Predicated region
        $region49: #{node1_forward.1} parent=47 // pred_check
          %p298 = pneg %p124
        $region50: #{node1_forward.1} parent=47 // pred_check_branch
          %300 = sbr.rel (%p298) target = $region52
        $region51: #{node1_forward.1} parent=47 // pred_region
          %p301 = scmp.lt.s32.totalorder %s22, 1
          %s302 = scalar_select %p301, %s22, 1
          %p303 = scmp.lt.s32.totalorder %s23, 0
          %s304 = scalar_select %p303, %s23, 0
          %s305 = smul.addr %s302, 3
          %s306 = sadd.s32 %s304, %s305
          %s307 = smul.addr %s306, 2
          %s308 = scalar_lea.vmem %s3, %s307
        $region52: #{node1_forward.1} parent=47 // pred_fallthru
          _
      $region48: #{node1_forward.1} parent=5 // pred_fallthru
        _
    $region6: #{node1_forward.1} parent=1 // loop_footer
      %s15 = sadd.s32 1, %s11
    $region7: #{node1_forward.1} parent=1 // loop_footer_branch
      %10 = sbr.rel target = $region3
    $region8: #{node1_forward.1} parent=1 // loop_exit
      _
    %309 = vsyncpa [#allocation3], 1
    %s310 = scalar_lea.sflag [#allocation3], 1
    %311 = vsyncpa %s310, 1
    %312 = vsyncpa [#allocation5], 1

</llo_original>
